<compile_context>
chip_gen: v5e
topology: v5e:2x2
jax: 0.10.0
libtpu: 0.0.40
codegen_flags: <defaults>
</compile_context>

<pallas_src>
import functools
import math

import numpy as np
import jax
import jax.numpy as jnp
from jax.experimental import pallas as pl
from jax.experimental.pallas import tpu as pltpu


def _pool_matmul_kernel(x_ref, p_ref, o_ref, *, inv_k):
    # x_ref: (tile_rows, g*kh*W)   g pooling bands per row, contiguous in lanes.
    # p_ref: (g*kh*W, g*out_W)     constant block-diagonal 0/1 pooling matrix
    #                              (resident: constant index_map -> no re-DMA).
    # o_ref: (tile_rows, g*out_W)  lane-dense output block.
    acc = jnp.dot(x_ref[...], p_ref[...], preferred_element_type=jnp.float32)
    o_ref[...] = (acc * inv_k).astype(o_ref.dtype)


def _device_budgets():
    """(input-block byte target, scoped-VMEM limit), tuned per TPU generation."""
    try:
        kind = jax.devices()[0].device_kind.lower()
    except Exception:
        kind = ""
    if "v7" in kind:
        # v7x: only 64 MiB VMEM per TensorCore -> smaller per-step footprint.
        return 5 * 1024 * 1024, 40 * 1024 * 1024
    # v5e / v6e: 128 MiB physical VMEM -> bigger blocks amortize per-step overhead.
    return 12 * 1024 * 1024, 64 * 1024 * 1024


def _choose_group(R, kh, W, out_W, itemsize, block_budget, p_budget):
    """Pick g bands per kernel row so the output lane dim approaches a 128-multiple."""
    g_lane = 128 // math.gcd(out_W, 128)  # smallest g with (g*out_W) % 128 == 0

    def fits(g):
        if R % g != 0:
            return False
        if g * kh * W * itemsize > block_budget:                   # one packed row
            return False
        if (g * kh * W) * (g * out_W) * itemsize > p_budget:       # pooling matrix
            return False
        return True

    if fits(g_lane):
        return g_lane
    best = 1
    for g in range(2, min(g_lane, R) + 1):   # largest fitting divisor of R <= g_lane
        if fits(g):
            best = g
    return best


def adaptive_avg_pool2d_efficient(x, output_size):
    """Pallas equivalent of MyAdaptiveAvgPool2dEfficient.forward (NCHW input)."""
    if isinstance(output_size, int):
        output_size = (output_size, output_size)
    N, C, H, W = x.shape
    out_H, out_W = output_size
    if H % out_H != 0 or W % out_W != 0:
        raise ValueError(
            "For this efficient implementation, H and W must be divisible "
            "by out_H and out_W."
        )
    kh = H // out_H
    kw = W // out_W
    K = kh * kw

    itemsize = jnp.dtype(x.dtype).itemsize
    block_budget, vmem_limit = _device_budgets()

    # One "band" per output row: R = N*C*out_H bands of length kh*W each.
    R = N * C * out_H
    g = _choose_group(R, kh, W, out_W, itemsize, block_budget,
                      p_budget=4 * 1024 * 1024)
    rows_total = R // g
    row_len = g * kh * W
    out_cols = g * out_W

    # Free, contiguous reshape (no HBM traffic).
    x2 = x.reshape(rows_total, row_len)

    # Constant block-diagonal pooling matrix. Entries are 1.0 (exact in any float
    # dtype); the 1/K scale is applied in f32 after the MXU accumulate.
    band = np.zeros((kh * W, out_W), dtype=np.float32)
    for di in range(kh):
        for j in range(out_W):
            band[di * W + j * kw: di * W + (j + 1) * kw, j] = 1.0
    pool_mat = jnp.asarray(np.kron(np.eye(g, dtype=np.float32), band), dtype=x.dtype)

    # Sublane alignment for the packed layout of this dtype (8 f32, 16 bf16, 32 i8).
    sublane = max(8, 32 // itemsize)
    row_bytes = row_len * itemsize
    if rows_total * row_bytes <= block_budget:
        tile_rows = rows_total
    else:
        tile_rows = max(1, block_budget // row_bytes)
        tile_rows = max(sublane, (tile_rows // sublane) * sublane)
        tile_rows = min(tile_rows, rows_total)

    # Keep both v7x TensorCores busy and double-buffering effective when possible.
    if pl.cdiv(rows_total, tile_rows) < 4 and rows_total >= 4 * sublane:
        tile_rows = max(sublane, ((rows_total // 4) // sublane) * sublane)

    num_blocks = pl.cdiv(rows_total, tile_rows)

    cost = pl.CostEstimate(
        flops=2 * rows_total * row_len * out_cols,
        transcendentals=0,
        bytes_accessed=(x2.size + pool_mat.size + rows_total * out_cols) * itemsize,
    )

    out2 = pl.pallas_call(
        functools.partial(_pool_matmul_kernel, inv_k=1.0 / K),
        out_shape=jax.ShapeDtypeStruct((rows_total, out_cols), x.dtype),
        grid=(num_blocks,),
        in_specs=[
            pl.BlockSpec((tile_rows, row_len), lambda i: (i, 0)),
            pl.BlockSpec((row_len, out_cols), lambda i: (0, 0)),  # resident constant
        ],
        out_specs=pl.BlockSpec((tile_rows, out_cols), lambda i: (i, 0)),
        compiler_params=pltpu.CompilerParams(
            dimension_semantics=("parallel",),
            vmem_limit_bytes=vmem_limit,
        ),
        cost_estimate=cost,
    )(x2, pool_mat)

    # Free reshape back to NCHW output layout.
    return out2.reshape(N, C, out_H, out_W)


def _reference(x, output_size):
    """Pure-JAX reference matching the PyTorch module semantics."""
    if isinstance(output_size, int):
        output_size = (output_size, output_size)
    N, C, H, W = x.shape
    out_H, out_W = output_size
    kh, kw = H // out_H, W // out_W
    xr = x.reshape(N, C, out_H, kh, out_W, kw)
    return xr.mean(axis=(3, 5))


if __name__ == "__main__":
    key = jax.random.PRNGKey(0)
    # Small shapes consistent with the module's (N, C, H, W) input.
    N, C, H, W = 2, 4, 16, 16
    output_size = 4  # -> (4, 4); H and W divisible by output size

    x = jax.random.normal(key, (N, C, H, W), dtype=jnp.float32)

    out = adaptive_avg_pool2d_efficient(x, output_size)
    out = jax.block_until_ready(out)

    ref = _reference(x, output_size)
    assert out.shape == (N, C, 4, 4), out.shape
    assert out.dtype == x.dtype, out.dtype
    assert jnp.allclose(out, ref, atol=1e-5, rtol=1e-5), "mismatch vs reference"

    print("KERNEL_OK")
</pallas_src>

<mosaic_0001>
module attributes {stable_mosaic.version = 11 : i64} {
  func.func @_pool_matmul_kernel(%arg0: i32, %arg1: memref<1x2048xf32, #tpu.memory_space<vmem>>, %arg2: memref<2048x128xf32, #tpu.memory_space<vmem>>, %arg3: memref<1x128xf32, #tpu.memory_space<vmem>>) attributes {dimension_semantics = [#tpu.dimension_semantics<parallel>], iteration_bounds = array<i64: 1>, scalar_prefetch = 0 : i64, scratch_operands = 0 : i64, tpu.core_type = #tpu.core_type<tc>, window_params = [{transform_indices = @transform_0, window_bounds = array<i64: 1, 2048>}, {pipeline_mode = #tpu.pipeline_mode<synchronous>, transform_indices = @transform_1, window_bounds = array<i64: 2048, 128>}, {transform_indices = @transform_2, window_bounds = array<i64: 1, 128>}]} {
    %c0 = arith.constant 0 : index
    %c0_0 = arith.constant 0 : index
    %0 = vector.load %arg1[%c0, %c0_0] : memref<1x2048xf32, #tpu.memory_space<vmem>>, vector<1x2048xf32>
    %c0_1 = arith.constant 0 : index
    %c0_2 = arith.constant 0 : index
    %1 = vector.load %arg2[%c0_1, %c0_2] : memref<2048x128xf32, #tpu.memory_space<vmem>>, vector<2048x128xf32>
    %cst = arith.constant dense<0.000000e+00> : vector<1x128xf32>
    %2 = tpu.matmul %0, %1, %cst {dimension_numbers = #tpu.dot_dimension_numbers<[1], [0], [0], [1], [0, 0, 1, 1], [], []>} : vector<1x2048xf32>, vector<2048x128xf32>, vector<1x128xf32> -> vector<1x128xf32>
    %cst_3 = arith.constant 6.250000e-02 : f32
    %3 = vector.broadcast %cst_3 : f32 to vector<1x128xf32>
    %4 = arith.mulf %2, %3 : vector<1x128xf32>
    %c0_4 = arith.constant 0 : index
    %c0_5 = arith.constant 0 : index
    %5 = vector.load %arg3[%c0_4, %c0_5] : memref<1x128xf32, #tpu.memory_space<vmem>>, vector<1x128xf32>
    tpu.vector_store %arg3[%c0_4, %c0_5], %4 {strides = array<i32>} : memref<1x128xf32, #tpu.memory_space<vmem>>, vector<1x128xf32>,
    return
  }
  func.func @transform_0(%arg0: i32) -> (i32, i32) {
    %c0_i32 = arith.constant 0 : i32
    %c0_i32_0 = arith.constant 0 : i32
    return %arg0, %c0_i32 : i32, i32
  }
  func.func @transform_1(%arg0: i32) -> (i32, i32) {
    %c0_i32 = arith.constant 0 : i32
    %c0_i32_0 = arith.constant 0 : i32
    %c0_i32_1 = arith.constant 0 : i32
    return %c0_i32, %c0_i32_0 : i32, i32
  }
  func.func @transform_2(%arg0: i32) -> (i32, i32) {
    %c0_i32 = arith.constant 0 : i32
    %c0_i32_0 = arith.constant 0 : i32
    return %arg0, %c0_i32 : i32, i32
  }
}

</mosaic_0001>

<llo_original>
// kernel: tpu_custom_call.1
$region0: #{tpu_custom_call.1}
  #allocation0 [shape = 'u32[]', space=smem, size = 0x4, offset = 0x4, fixed_abs, tag = 'smem constant byte address 0x4 - core index']
  #allocation1 [shape = 'u32[72,128]{1,0:T(1,128)}', space=vmem, size = 0x9000, scoped, tag = 'internal scratch']
  %s0 = inlined_call_operand.hbm [shape: f32[1,2048], index: 0, kind: input, shape index: {}]
  %s1 = inlined_call_operand.hbm [shape: f32[2048,128], index: 1, kind: input, shape index: {}]
  %s2 = inlined_call_operand.hbm [shape: f32[1,128], index: 2, kind: output, shape index: {}]
  %s3 = sld [smem:[#allocation0]]
  $region26: #{tpu_custom_call.1} parent=0
    _
  %s5 = ssub.s32 1, %s3
  %s6 = scalar_select 0, %s5, %s3
  $region1: #{tpu_custom_call.1} parent=0
    #allocation2 [shape = 'u8[8192]{0}', space=vmem, size = 0x2000, scoped, tag = 'input window, operand 0, single buffered']
    #allocation3 [shape = 's32[1]{0}', space=sflag, size = 0x4, scoped, tag = 'scoped memory for tpu_custom_call.1']
    #allocation4 [shape = 's32[1]{0}', space=sflag, size = 0x4, scoped, tag = 'scoped memory for tpu_custom_call.1']
    #allocation5 [shape = 'u8[1048576]{0}', space=vmem, size = 0x100000, scoped, tag = 'input window, operand 1, single buffered']
    #allocation6 [shape = 's32[1]{0}', space=sflag, size = 0x4, scoped, tag = 'scoped memory for tpu_custom_call.1']
    #allocation7 [shape = 'u8[512]{0}', space=vmem, size = 0x400, scoped, tag = 'output window, operand 0, single buffered']
    %7 = vsyncpa [#allocation3], 0
    %8 = vsyncpa [#allocation6], 0
    %9 = vsyncpa [#allocation4], 0
    // Predicated region
    $region2: #{tpu_custom_call.1} parent=1 // pred_check
      _
    $region3: #{tpu_custom_call.1} parent=1 // pred_check_branch
      %11 = sbr.rel (0) target = $region5
    $region4: #{tpu_custom_call.1} parent=1 // pred_region
      %13 = vsyncadd [#allocation3], 0
      %s15 = sshll.u32 %s0, 4
      %s16 = int_to_ptr.hbm [resolvable:$true] %s15
      %s17 = sshll.u32 [#allocation2], 4
      %s18 = int_to_ptr.vmem [resolvable:$true] %s17
      %20 = dma.hbm_to_vmem [thread:$0]  %s16, 256, %s18, [#allocation3]
    $region5: #{tpu_custom_call.1} parent=1 // pred_fallthru
      _
    // Predicated region
    $region6: #{tpu_custom_call.1} parent=1 // pred_check
      _
    $region7: #{tpu_custom_call.1} parent=1 // pred_check_branch
      %22 = sbr.rel (0) target = $region9
    $region8: #{tpu_custom_call.1} parent=1 // pred_region
      %24 = vsyncadd [#allocation6], 0
      %s25 = sshll.u32 %s1, 4
      %s26 = int_to_ptr.hbm [resolvable:$true] %s25
      %s27 = sshll.u32 [#allocation5], 4
      %s28 = int_to_ptr.vmem [resolvable:$true] %s27
      %33 = dma.hbm_to_vmem [thread:$0]  %s26, 32768, %s28, [#allocation6], 128, 128, 8
    $region9: #{tpu_custom_call.1} parent=1 // pred_fallthru
      _
    // Predicated region
    $region10: #{tpu_custom_call.1} parent=1 // pred_check
      _
    $region11: #{tpu_custom_call.1} parent=1 // pred_check_branch
      %35 = sbr.rel (0) target = $region13
    $region12: #{tpu_custom_call.1} parent=1 // pred_region
      %37 = dma.done [#allocation3], 256
    $region13: #{tpu_custom_call.1} parent=1 // pred_fallthru
      _
    // Predicated region
    $region14: #{tpu_custom_call.1} parent=1 // pred_check
      _
    $region15: #{tpu_custom_call.1} parent=1 // pred_check_branch
      %39 = sbr.rel (0) target = $region17
    $region16: #{tpu_custom_call.1} parent=1 // pred_region
      %41 = dma.done [#allocation6], 32768
    $region17: #{tpu_custom_call.1} parent=1 // pred_fallthru
      _
    %v42 = vld [vmem:[#allocation2] sm:$0xff]
    %v43 = vld [vmem:[#allocation2 + $0x8] sm:$0xff]
    %v44 = vld [vmem:[#allocation5] sm:$0xff]
    %v45 = vld [vmem:[#allocation5 + $0x8] sm:$0xff]
    %v46 = vld [vmem:[#allocation5 + $0x10] sm:$0xff]
    %v47 = vld [vmem:[#allocation5 + $0x18] sm:$0xff]
    %v48 = vld [vmem:[#allocation5 + $0x20] sm:$0xff]
    %v49 = vld [vmem:[#allocation5 + $0x28] sm:$0xff]
    %v50 = vld [vmem:[#allocation5 + $0x30] sm:$0xff]
    %v51 = vld [vmem:[#allocation5 + $0x38] sm:$0xff]
    %v52 = vld [vmem:[#allocation5 + $0x40] sm:$0xff]
    %v53 = vld [vmem:[#allocation5 + $0x48] sm:$0xff]
    %v54 = vld [vmem:[#allocation5 + $0x50] sm:$0xff]
    %v55 = vld [vmem:[#allocation5 + $0x58] sm:$0xff]
    %v56 = vld [vmem:[#allocation5 + $0x60] sm:$0xff]
    %v57 = vld [vmem:[#allocation5 + $0x68] sm:$0xff]
    %v58 = vld [vmem:[#allocation5 + $0x70] sm:$0xff]
    %v59 = vld [vmem:[#allocation5 + $0x78] sm:$0xff]
    %v60 = vld [vmem:[#allocation5 + $0x80] sm:$0xff]
    %v61 = vld [vmem:[#allocation5 + $0x88] sm:$0xff]
    %v62 = vld [vmem:[#allocation5 + $0x90] sm:$0xff]
    %v63 = vld [vmem:[#allocation5 + $0x98] sm:$0xff]
    %v64 = vld [vmem:[#allocation5 + $0xa0] sm:$0xff]
    %v65 = vld [vmem:[#allocation5 + $0xa8] sm:$0xff]
    %v66 = vld [vmem:[#allocation5 + $0xb0] sm:$0xff]
    %v67 = vld [vmem:[#allocation5 + $0xb8] sm:$0xff]
    %v68 = vld [vmem:[#allocation5 + $0xc0] sm:$0xff]
    %v69 = vld [vmem:[#allocation5 + $0xc8] sm:$0xff]
    %v70 = vld [vmem:[#allocation5 + $0xd0] sm:$0xff]
    %v71 = vld [vmem:[#allocation5 + $0xd8] sm:$0xff]
    %v72 = vld [vmem:[#allocation5 + $0xe0] sm:$0xff]
    %v73 = vld [vmem:[#allocation5 + $0xe8] sm:$0xff]
    %v74 = vld [vmem:[#allocation5 + $0xf0] sm:$0xff]
    %v75 = vld [vmem:[#allocation5 + $0xf8] sm:$0xff]
    %v76 = vld [vmem:[#allocation5 + $0x100] sm:$0xff]
    %v77 = vld [vmem:[#allocation5 + $0x108] sm:$0xff]
    %v78 = vld [vmem:[#allocation5 + $0x110] sm:$0xff]
    %v79 = vld [vmem:[#allocation5 + $0x118] sm:$0xff]
    %v80 = vld [vmem:[#allocation5 + $0x120] sm:$0xff]
    %v81 = vld [vmem:[#allocation5 + $0x128] sm:$0xff]
    %v82 = vld [vmem:[#allocation5 + $0x130] sm:$0xff]
    %v83 = vld [vmem:[#allocation5 + $0x138] sm:$0xff]
    %v84 = vld [vmem:[#allocation5 + $0x140] sm:$0xff]
    %v85 = vld [vmem:[#allocation5 + $0x148] sm:$0xff]
    %v86 = vld [vmem:[#allocation5 + $0x150] sm:$0xff]
    %v87 = vld [vmem:[#allocation5 + $0x158] sm:$0xff]
    %v88 = vld [vmem:[#allocation5 + $0x160] sm:$0xff]
    %v89 = vld [vmem:[#allocation5 + $0x168] sm:$0xff]
    %v90 = vld [vmem:[#allocation5 + $0x170] sm:$0xff]
    %v91 = vld [vmem:[#allocation5 + $0x178] sm:$0xff]
    %v92 = vld [vmem:[#allocation5 + $0x180] sm:$0xff]
    %v93 = vld [vmem:[#allocation5 + $0x188] sm:$0xff]
    %v94 = vld [vmem:[#allocation5 + $0x190] sm:$0xff]
    %v95 = vld [vmem:[#allocation5 + $0x198] sm:$0xff]
    %v96 = vld [vmem:[#allocation5 + $0x1a0] sm:$0xff]
    %v97 = vld [vmem:[#allocation5 + $0x1a8] sm:$0xff]
    %v98 = vld [vmem:[#allocation5 + $0x1b0] sm:$0xff]
    %v99 = vld [vmem:[#allocation5 + $0x1b8] sm:$0xff]
    %v100 = vld [vmem:[#allocation5 + $0x1c0] sm:$0xff]
    %v101 = vld [vmem:[#allocation5 + $0x1c8] sm:$0xff]
    %v102 = vld [vmem:[#allocation5 + $0x1d0] sm:$0xff]
    %v103 = vld [vmem:[#allocation5 + $0x1d8] sm:$0xff]
    %v104 = vld [vmem:[#allocation5 + $0x1e0] sm:$0xff]
    %v105 = vld [vmem:[#allocation5 + $0x1e8] sm:$0xff]
    %v106 = vld [vmem:[#allocation5 + $0x1f0] sm:$0xff]
    %v107 = vld [vmem:[#allocation5 + $0x1f8] sm:$0xff]
    %v108 = vld [vmem:[#allocation5 + $0x200] sm:$0xff]
    %v109 = vld [vmem:[#allocation5 + $0x208] sm:$0xff]
    %v110 = vld [vmem:[#allocation5 + $0x210] sm:$0xff]
    %v111 = vld [vmem:[#allocation5 + $0x218] sm:$0xff]
    %v112 = vld [vmem:[#allocation5 + $0x220] sm:$0xff]
    %v113 = vld [vmem:[#allocation5 + $0x228] sm:$0xff]
    %v114 = vld [vmem:[#allocation5 + $0x230] sm:$0xff]
    %v115 = vld [vmem:[#allocation5 + $0x238] sm:$0xff]
    %v116 = vld [vmem:[#allocation5 + $0x240] sm:$0xff]
    %v117 = vld [vmem:[#allocation5 + $0x248] sm:$0xff]
    %v118 = vld [vmem:[#allocation5 + $0x250] sm:$0xff]
    %v119 = vld [vmem:[#allocation5 + $0x258] sm:$0xff]
    %v120 = vld [vmem:[#allocation5 + $0x260] sm:$0xff]
    %v121 = vld [vmem:[#allocation5 + $0x268] sm:$0xff]
    %v122 = vld [vmem:[#allocation5 + $0x270] sm:$0xff]
    %v123 = vld [vmem:[#allocation5 + $0x278] sm:$0xff]
    %v124 = vld [vmem:[#allocation5 + $0x280] sm:$0xff]
    %v125 = vld [vmem:[#allocation5 + $0x288] sm:$0xff]
    %v126 = vld [vmem:[#allocation5 + $0x290] sm:$0xff]
    %v127 = vld [vmem:[#allocation5 + $0x298] sm:$0xff]
    %v128 = vld [vmem:[#allocation5 + $0x2a0] sm:$0xff]
    %v129 = vld [vmem:[#allocation5 + $0x2a8] sm:$0xff]
    %v130 = vld [vmem:[#allocation5 + $0x2b0] sm:$0xff]
    %v131 = vld [vmem:[#allocation5 + $0x2b8] sm:$0xff]
    %v132 = vld [vmem:[#allocation5 + $0x2c0] sm:$0xff]
    %v133 = vld [vmem:[#allocation5 + $0x2c8] sm:$0xff]
    %v134 = vld [vmem:[#allocation5 + $0x2d0] sm:$0xff]
    %v135 = vld [vmem:[#allocation5 + $0x2d8] sm:$0xff]
    %v136 = vld [vmem:[#allocation5 + $0x2e0] sm:$0xff]
    %v137 = vld [vmem:[#allocation5 + $0x2e8] sm:$0xff]
    %v138 = vld [vmem:[#allocation5 + $0x2f0] sm:$0xff]
    %v139 = vld [vmem:[#allocation5 + $0x2f8] sm:$0xff]
    %v140 = vld [vmem:[#allocation5 + $0x300] sm:$0xff]
    %v141 = vld [vmem:[#allocation5 + $0x308] sm:$0xff]
    %v142 = vld [vmem:[#allocation5 + $0x310] sm:$0xff]
    %v143 = vld [vmem:[#allocation5 + $0x318] sm:$0xff]
    %v144 = vld [vmem:[#allocation5 + $0x320] sm:$0xff]
    %v145 = vld [vmem:[#allocation5 + $0x328] sm:$0xff]
    %v146 = vld [vmem:[#allocation5 + $0x330] sm:$0xff]
    %v147 = vld [vmem:[#allocation5 + $0x338] sm:$0xff]
    %v148 = vld [vmem:[#allocation5 + $0x340] sm:$0xff]
    %v149 = vld [vmem:[#allocation5 + $0x348] sm:$0xff]
    %v150 = vld [vmem:[#allocation5 + $0x350] sm:$0xff]
    %v151 = vld [vmem:[#allocation5 + $0x358] sm:$0xff]
    %v152 = vld [vmem:[#allocation5 + $0x360] sm:$0xff]
    %v153 = vld [vmem:[#allocation5 + $0x368] sm:$0xff]
    %v154 = vld [vmem:[#allocation5 + $0x370] sm:$0xff]
    %v155 = vld [vmem:[#allocation5 + $0x378] sm:$0xff]
    %v156 = vld [vmem:[#allocation5 + $0x380] sm:$0xff]
    %v157 = vld [vmem:[#allocation5 + $0x388] sm:$0xff]
    %v158 = vld [vmem:[#allocation5 + $0x390] sm:$0xff]
    %v159 = vld [vmem:[#allocation5 + $0x398] sm:$0xff]
    %v160 = vld [vmem:[#allocation5 + $0x3a0] sm:$0xff]
    %v161 = vld [vmem:[#allocation5 + $0x3a8] sm:$0xff]
    %v162 = vld [vmem:[#allocation5 + $0x3b0] sm:$0xff]
    %v163 = vld [vmem:[#allocation5 + $0x3b8] sm:$0xff]
    %v164 = vld [vmem:[#allocation5 + $0x3c0] sm:$0xff]
    %v165 = vld [vmem:[#allocation5 + $0x3c8] sm:$0xff]
    %v166 = vld [vmem:[#allocation5 + $0x3d0] sm:$0xff]
    %v167 = vld [vmem:[#allocation5 + $0x3d8] sm:$0xff]
    %v168 = vld [vmem:[#allocation5 + $0x3e0] sm:$0xff]
    %v169 = vld [vmem:[#allocation5 + $0x3e8] sm:$0xff]
    %v170 = vld [vmem:[#allocation5 + $0x3f0] sm:$0xff]
    %v171 = vld [vmem:[#allocation5 + $0x3f8] sm:$0xff]
    %v172 = vld [vmem:[#allocation5 + $0x400] sm:$0xff]
    %v173 = vld [vmem:[#allocation5 + $0x408] sm:$0xff]
    %v174 = vld [vmem:[#allocation5 + $0x410] sm:$0xff]
    %v175 = vld [vmem:[#allocation5 + $0x418] sm:$0xff]
    %v176 = vld [vmem:[#allocation5 + $0x420] sm:$0xff]
    %v177 = vld [vmem:[#allocation5 + $0x428] sm:$0xff]
    %v178 = vld [vmem:[#allocation5 + $0x430] sm:$0xff]
    %v179 = vld [vmem:[#allocation5 + $0x438] sm:$0xff]
    %v180 = vld [vmem:[#allocation5 + $0x440] sm:$0xff]
    %v181 = vld [vmem:[#allocation5 + $0x448] sm:$0xff]
    %v182 = vld [vmem:[#allocation5 + $0x450] sm:$0xff]
    %v183 = vld [vmem:[#allocation5 + $0x458] sm:$0xff]
    %v184 = vld [vmem:[#allocation5 + $0x460] sm:$0xff]
    %v185 = vld [vmem:[#allocation5 + $0x468] sm:$0xff]
    %v186 = vld [vmem:[#allocation5 + $0x470] sm:$0xff]
    %v187 = vld [vmem:[#allocation5 + $0x478] sm:$0xff]
    %v188 = vld [vmem:[#allocation5 + $0x480] sm:$0xff]
    %v189 = vld [vmem:[#allocation5 + $0x488] sm:$0xff]
    %v190 = vld [vmem:[#allocation5 + $0x490] sm:$0xff]
    %v191 = vld [vmem:[#allocation5 + $0x498] sm:$0xff]
    %v192 = vld [vmem:[#allocation5 + $0x4a0] sm:$0xff]
    %v193 = vld [vmem:[#allocation5 + $0x4a8] sm:$0xff]
    %v194 = vld [vmem:[#allocation5 + $0x4b0] sm:$0xff]
    %v195 = vld [vmem:[#allocation5 + $0x4b8] sm:$0xff]
    %v196 = vld [vmem:[#allocation5 + $0x4c0] sm:$0xff]
    %v197 = vld [vmem:[#allocation5 + $0x4c8] sm:$0xff]
    %v198 = vld [vmem:[#allocation5 + $0x4d0] sm:$0xff]
    %v199 = vld [vmem:[#allocation5 + $0x4d8] sm:$0xff]
    %v200 = vld [vmem:[#allocation5 + $0x4e0] sm:$0xff]
    %v201 = vld [vmem:[#allocation5 + $0x4e8] sm:$0xff]
    %v202 = vld [vmem:[#allocation5 + $0x4f0] sm:$0xff]
    %v203 = vld [vmem:[#allocation5 + $0x4f8] sm:$0xff]
    %v204 = vld [vmem:[#allocation5 + $0x500] sm:$0xff]
    %v205 = vld [vmem:[#allocation5 + $0x508] sm:$0xff]
    %v206 = vld [vmem:[#allocation5 + $0x510] sm:$0xff]
    %v207 = vld [vmem:[#allocation5 + $0x518] sm:$0xff]
    %v208 = vld [vmem:[#allocation5 + $0x520] sm:$0xff]
    %v209 = vld [vmem:[#allocation5 + $0x528] sm:$0xff]
    %v210 = vld [vmem:[#allocation5 + $0x530] sm:$0xff]
    %v211 = vld [vmem:[#allocation5 + $0x538] sm:$0xff]
    %v212 = vld [vmem:[#allocation5 + $0x540] sm:$0xff]
    %v213 = vld [vmem:[#allocation5 + $0x548] sm:$0xff]
    %v214 = vld [vmem:[#allocation5 + $0x550] sm:$0xff]
    %v215 = vld [vmem:[#allocation5 + $0x558] sm:$0xff]
    %v216 = vld [vmem:[#allocation5 + $0x560] sm:$0xff]
    %v217 = vld [vmem:[#allocation5 + $0x568] sm:$0xff]
    %v218 = vld [vmem:[#allocation5 + $0x570] sm:$0xff]
    %v219 = vld [vmem:[#allocation5 + $0x578] sm:$0xff]
    %v220 = vld [vmem:[#allocation5 + $0x580] sm:$0xff]
    %v221 = vld [vmem:[#allocation5 + $0x588] sm:$0xff]
    %v222 = vld [vmem:[#allocation5 + $0x590] sm:$0xff]
    %v223 = vld [vmem:[#allocation5 + $0x598] sm:$0xff]
    %v224 = vld [vmem:[#allocation5 + $0x5a0] sm:$0xff]
    %v225 = vld [vmem:[#allocation5 + $0x5a8] sm:$0xff]
    %v226 = vld [vmem:[#allocation5 + $0x5b0] sm:$0xff]
    %v227 = vld [vmem:[#allocation5 + $0x5b8] sm:$0xff]
    %v228 = vld [vmem:[#allocation5 + $0x5c0] sm:$0xff]
    %v229 = vld [vmem:[#allocation5 + $0x5c8] sm:$0xff]
    %v230 = vld [vmem:[#allocation5 + $0x5d0] sm:$0xff]
    %v231 = vld [vmem:[#allocation5 + $0x5d8] sm:$0xff]
    %v232 = vld [vmem:[#allocation5 + $0x5e0] sm:$0xff]
    %v233 = vld [vmem:[#allocation5 + $0x5e8] sm:$0xff]
    %v234 = vld [vmem:[#allocation5 + $0x5f0] sm:$0xff]
    %v235 = vld [vmem:[#allocation5 + $0x5f8] sm:$0xff]
    %v236 = vld [vmem:[#allocation5 + $0x600] sm:$0xff]
    %v237 = vld [vmem:[#allocation5 + $0x608] sm:$0xff]
    %v238 = vld [vmem:[#allocation5 + $0x610] sm:$0xff]
    %v239 = vld [vmem:[#allocation5 + $0x618] sm:$0xff]
    %v240 = vld [vmem:[#allocation5 + $0x620] sm:$0xff]
    %v241 = vld [vmem:[#allocation5 + $0x628] sm:$0xff]
    %v242 = vld [vmem:[#allocation5 + $0x630] sm:$0xff]
    %v243 = vld [vmem:[#allocation5 + $0x638] sm:$0xff]
    %v244 = vld [vmem:[#allocation5 + $0x640] sm:$0xff]
    %v245 = vld [vmem:[#allocation5 + $0x648] sm:$0xff]
    %v246 = vld [vmem:[#allocation5 + $0x650] sm:$0xff]
    %v247 = vld [vmem:[#allocation5 + $0x658] sm:$0xff]
    %v248 = vld [vmem:[#allocation5 + $0x660] sm:$0xff]
    %v249 = vld [vmem:[#allocation5 + $0x668] sm:$0xff]
    %v250 = vld [vmem:[#allocation5 + $0x670] sm:$0xff]
    %v251 = vld [vmem:[#allocation5 + $0x678] sm:$0xff]
    %v252 = vld [vmem:[#allocation5 + $0x680] sm:$0xff]
    %v253 = vld [vmem:[#allocation5 + $0x688] sm:$0xff]
    %v254 = vld [vmem:[#allocation5 + $0x690] sm:$0xff]
    %v255 = vld [vmem:[#allocation5 + $0x698] sm:$0xff]
    %v256 = vld [vmem:[#allocation5 + $0x6a0] sm:$0xff]
    %v257 = vld [vmem:[#allocation5 + $0x6a8] sm:$0xff]
    %v258 = vld [vmem:[#allocation5 + $0x6b0] sm:$0xff]
    %v259 = vld [vmem:[#allocation5 + $0x6b8] sm:$0xff]
    %v260 = vld [vmem:[#allocation5 + $0x6c0] sm:$0xff]
    %v261 = vld [vmem:[#allocation5 + $0x6c8] sm:$0xff]
    %v262 = vld [vmem:[#allocation5 + $0x6d0] sm:$0xff]
    %v263 = vld [vmem:[#allocation5 + $0x6d8] sm:$0xff]
    %v264 = vld [vmem:[#allocation5 + $0x6e0] sm:$0xff]
    %v265 = vld [vmem:[#allocation5 + $0x6e8] sm:$0xff]
    %v266 = vld [vmem:[#allocation5 + $0x6f0] sm:$0xff]
    %v267 = vld [vmem:[#allocation5 + $0x6f8] sm:$0xff]
    %v268 = vld [vmem:[#allocation5 + $0x700] sm:$0xff]
    %v269 = vld [vmem:[#allocation5 + $0x708] sm:$0xff]
    %v270 = vld [vmem:[#allocation5 + $0x710] sm:$0xff]
    %v271 = vld [vmem:[#allocation5 + $0x718] sm:$0xff]
    %v272 = vld [vmem:[#allocation5 + $0x720] sm:$0xff]
    %v273 = vld [vmem:[#allocation5 + $0x728] sm:$0xff]
    %v274 = vld [vmem:[#allocation5 + $0x730] sm:$0xff]
    %v275 = vld [vmem:[#allocation5 + $0x738] sm:$0xff]
    %v276 = vld [vmem:[#allocation5 + $0x740] sm:$0xff]
    %v277 = vld [vmem:[#allocation5 + $0x748] sm:$0xff]
    %v278 = vld [vmem:[#allocation5 + $0x750] sm:$0xff]
    %v279 = vld [vmem:[#allocation5 + $0x758] sm:$0xff]
    %v280 = vld [vmem:[#allocation5 + $0x760] sm:$0xff]
    %v281 = vld [vmem:[#allocation5 + $0x768] sm:$0xff]
    %v282 = vld [vmem:[#allocation5 + $0x770] sm:$0xff]
    %v283 = vld [vmem:[#allocation5 + $0x778] sm:$0xff]
    %v284 = vld [vmem:[#allocation5 + $0x780] sm:$0xff]
    %v285 = vld [vmem:[#allocation5 + $0x788] sm:$0xff]
    %v286 = vld [vmem:[#allocation5 + $0x790] sm:$0xff]
    %v287 = vld [vmem:[#allocation5 + $0x798] sm:$0xff]
    %v288 = vld [vmem:[#allocation5 + $0x7a0] sm:$0xff]
    %v289 = vld [vmem:[#allocation5 + $0x7a8] sm:$0xff]
    %v290 = vld [vmem:[#allocation5 + $0x7b0] sm:$0xff]
    %v291 = vld [vmem:[#allocation5 + $0x7b8] sm:$0xff]
    %v292 = vld [vmem:[#allocation5 + $0x7c0] sm:$0xff]
    %v293 = vld [vmem:[#allocation5 + $0x7c8] sm:$0xff]
    %v294 = vld [vmem:[#allocation5 + $0x7d0] sm:$0xff]
    %v295 = vld [vmem:[#allocation5 + $0x7d8] sm:$0xff]
    %v296 = vld [vmem:[#allocation5 + $0x7e0] sm:$0xff]
    %v297 = vld [vmem:[#allocation5 + $0x7e8] sm:$0xff]
    %v298 = vld [vmem:[#allocation5 + $0x7f0] sm:$0xff]
    %v299 = vld [vmem:[#allocation5 + $0x7f8] sm:$0xff]
    %v302 = vperm.slane %v42, 0
    %v303 = vperm.slane %v42, 1
    %v304 = vperm.slane %v42, 2
    %v305 = vperm.slane %v42, 3
    %v306 = vperm.slane %v42, 4
    %v307 = vperm.slane %v42, 5
    %v308 = vperm.slane %v42, 6
    %v309 = vperm.slane %v42, 7
    %v310 = vperm.slane %v43, 0
    %v311 = vperm.slane %v43, 1
    %v312 = vperm.slane %v43, 2
    %v313 = vperm.slane %v43, 3
    %v314 = vperm.slane %v43, 4
    %v315 = vperm.slane %v43, 5
    %v316 = vperm.slane %v43, 6
    %v317 = vperm.slane %v43, 7
    %334 = vmatpush.msra.mxu0 %v59
    %335 = vmatpush.msra.mxu0 %v58
    %336 = vmatpush.msra.mxu0 %v57
    %337 = vmatpush.msra.mxu0 %v56
    %338 = vmatpush.msra.mxu0 %v55
    %339 = vmatpush.msra.mxu0 %v54
    %340 = vmatpush.msra.mxu0 %v53
    %341 = vmatpush.msra.mxu0 %v52
    %342 = vmatpush.msra.mxu0 %v51
    %343 = vmatpush.msra.mxu0 %v50
    %344 = vmatpush.msra.mxu0 %v49
    %345 = vmatpush.msra.mxu0 %v48
    %346 = vmatpush.msra.mxu0 %v47
    %347 = vmatpush.msra.mxu0 %v46
    %348 = vmatpush.msra.mxu0 %v45
    %349 = vmatpush.msra.mxu0 %v44
    %350 = vmatmul.f32.gmra.mxu0 %v302
    %v351 = vpop.f32.mrf.mxu0
    %v352 = vadd.f32 0.0, %v351
    %353 = vdwg.mxu0
    %354 = vmatpush.msra.mxu0 %v75
    %355 = vmatpush.msra.mxu0 %v74
    %356 = vmatpush.msra.mxu0 %v73
    %357 = vmatpush.msra.mxu0 %v72
    %358 = vmatpush.msra.mxu0 %v71
    %359 = vmatpush.msra.mxu0 %v70
    %360 = vmatpush.msra.mxu0 %v69
    %361 = vmatpush.msra.mxu0 %v68
    %362 = vmatpush.msra.mxu0 %v67
    %363 = vmatpush.msra.mxu0 %v66
    %364 = vmatpush.msra.mxu0 %v65
    %365 = vmatpush.msra.mxu0 %v64
    %366 = vmatpush.msra.mxu0 %v63
    %367 = vmatpush.msra.mxu0 %v62
    %368 = vmatpush.msra.mxu0 %v61
    %369 = vmatpush.msra.mxu0 %v60
    %370 = vmatmul.f32.gmra.mxu0 %v303
    %v371 = vpop.f32.mrf.mxu0
    %v372 = vadd.f32 %v352, %v371
    %373 = vdwg.mxu0
    %374 = vmatpush.msra.mxu0 %v91
    %375 = vmatpush.msra.mxu0 %v90
    %376 = vmatpush.msra.mxu0 %v89
    %377 = vmatpush.msra.mxu0 %v88
    %378 = vmatpush.msra.mxu0 %v87
    %379 = vmatpush.msra.mxu0 %v86
    %380 = vmatpush.msra.mxu0 %v85
    %381 = vmatpush.msra.mxu0 %v84
    %382 = vmatpush.msra.mxu0 %v83
    %383 = vmatpush.msra.mxu0 %v82
    %384 = vmatpush.msra.mxu0 %v81
    %385 = vmatpush.msra.mxu0 %v80
    %386 = vmatpush.msra.mxu0 %v79
    %387 = vmatpush.msra.mxu0 %v78
    %388 = vmatpush.msra.mxu0 %v77
    %389 = vmatpush.msra.mxu0 %v76
    %390 = vmatmul.f32.gmra.mxu0 %v304
    %v391 = vpop.f32.mrf.mxu0
    %v392 = vadd.f32 %v372, %v391
    %393 = vdwg.mxu0
    %394 = vmatpush.msra.mxu0 %v107
    %395 = vmatpush.msra.mxu0 %v106
    %396 = vmatpush.msra.mxu0 %v105
    %397 = vmatpush.msra.mxu0 %v104
    %398 = vmatpush.msra.mxu0 %v103
    %399 = vmatpush.msra.mxu0 %v102
    %400 = vmatpush.msra.mxu0 %v101
    %401 = vmatpush.msra.mxu0 %v100
    %402 = vmatpush.msra.mxu0 %v99
    %403 = vmatpush.msra.mxu0 %v98
    %404 = vmatpush.msra.mxu0 %v97
    %405 = vmatpush.msra.mxu0 %v96
    %406 = vmatpush.msra.mxu0 %v95
    %407 = vmatpush.msra.mxu0 %v94
    %408 = vmatpush.msra.mxu0 %v93
    %409 = vmatpush.msra.mxu0 %v92
    %410 = vmatmul.f32.gmra.mxu0 %v305
    %v411 = vpop.f32.mrf.mxu0
    %v412 = vadd.f32 %v392, %v411
    %413 = vdwg.mxu0
    %414 = vmatpush.msra.mxu0 %v123
    %415 = vmatpush.msra.mxu0 %v122
    %416 = vmatpush.msra.mxu0 %v121
    %417 = vmatpush.msra.mxu0 %v120
    %418 = vmatpush.msra.mxu0 %v119
    %419 = vmatpush.msra.mxu0 %v118
    %420 = vmatpush.msra.mxu0 %v117
    %421 = vmatpush.msra.mxu0 %v116
    %422 = vmatpush.msra.mxu0 %v115
    %423 = vmatpush.msra.mxu0 %v114
    %424 = vmatpush.msra.mxu0 %v113
    %425 = vmatpush.msra.mxu0 %v112
    %426 = vmatpush.msra.mxu0 %v111
    %427 = vmatpush.msra.mxu0 %v110
    %428 = vmatpush.msra.mxu0 %v109
    %429 = vmatpush.msra.mxu0 %v108
    %430 = vmatmul.f32.gmra.mxu0 %v306
    %v431 = vpop.f32.mrf.mxu0
    %v432 = vadd.f32 %v412, %v431
    %433 = vdwg.mxu0
    %434 = vmatpush.msra.mxu0 %v139
    %435 = vmatpush.msra.mxu0 %v138
    %436 = vmatpush.msra.mxu0 %v137
    %437 = vmatpush.msra.mxu0 %v136
    %438 = vmatpush.msra.mxu0 %v135
    %439 = vmatpush.msra.mxu0 %v134
    %440 = vmatpush.msra.mxu0 %v133
    %441 = vmatpush.msra.mxu0 %v132
    %442 = vmatpush.msra.mxu0 %v131
    %443 = vmatpush.msra.mxu0 %v130
    %444 = vmatpush.msra.mxu0 %v129
    %445 = vmatpush.msra.mxu0 %v128
    %446 = vmatpush.msra.mxu0 %v127
    %447 = vmatpush.msra.mxu0 %v126
    %448 = vmatpush.msra.mxu0 %v125
    %449 = vmatpush.msra.mxu0 %v124
    %450 = vmatmul.f32.gmra.mxu0 %v307
    %v451 = vpop.f32.mrf.mxu0
    %v452 = vadd.f32 %v432, %v451
    %453 = vdwg.mxu0
    %454 = vmatpush.msra.mxu0 %v155
    %455 = vmatpush.msra.mxu0 %v154
    %456 = vmatpush.msra.mxu0 %v153
    %457 = vmatpush.msra.mxu0 %v152
    %458 = vmatpush.msra.mxu0 %v151
    %459 = vmatpush.msra.mxu0 %v150
    %460 = vmatpush.msra.mxu0 %v149
    %461 = vmatpush.msra.mxu0 %v148
    %462 = vmatpush.msra.mxu0 %v147
    %463 = vmatpush.msra.mxu0 %v146
    %464 = vmatpush.msra.mxu0 %v145
    %465 = vmatpush.msra.mxu0 %v144
    %466 = vmatpush.msra.mxu0 %v143
    %467 = vmatpush.msra.mxu0 %v142
    %468 = vmatpush.msra.mxu0 %v141
    %469 = vmatpush.msra.mxu0 %v140
    %470 = vmatmul.f32.gmra.mxu0 %v308
    %v471 = vpop.f32.mrf.mxu0
    %v472 = vadd.f32 %v452, %v471
    %473 = vdwg.mxu0
    %474 = vmatpush.msra.mxu0 %v171
    %475 = vmatpush.msra.mxu0 %v170
    %476 = vmatpush.msra.mxu0 %v169
    %477 = vmatpush.msra.mxu0 %v168
    %478 = vmatpush.msra.mxu0 %v167
    %479 = vmatpush.msra.mxu0 %v166
    %480 = vmatpush.msra.mxu0 %v165
    %481 = vmatpush.msra.mxu0 %v164
    %482 = vmatpush.msra.mxu0 %v163
    %483 = vmatpush.msra.mxu0 %v162
    %484 = vmatpush.msra.mxu0 %v161
    %485 = vmatpush.msra.mxu0 %v160
    %486 = vmatpush.msra.mxu0 %v159
    %487 = vmatpush.msra.mxu0 %v158
    %488 = vmatpush.msra.mxu0 %v157
    %489 = vmatpush.msra.mxu0 %v156
    %490 = vmatmul.f32.gmra.mxu0 %v309
    %v491 = vpop.f32.mrf.mxu0
    %v492 = vadd.f32 %v472, %v491
    %493 = vdwg.mxu0
    %494 = vmatpush.msra.mxu0 %v187
    %495 = vmatpush.msra.mxu0 %v186
    %496 = vmatpush.msra.mxu0 %v185
    %497 = vmatpush.msra.mxu0 %v184
    %498 = vmatpush.msra.mxu0 %v183
    %499 = vmatpush.msra.mxu0 %v182
    %500 = vmatpush.msra.mxu0 %v181
    %501 = vmatpush.msra.mxu0 %v180
    %502 = vmatpush.msra.mxu0 %v179
    %503 = vmatpush.msra.mxu0 %v178
    %504 = vmatpush.msra.mxu0 %v177
    %505 = vmatpush.msra.mxu0 %v176
    %506 = vmatpush.msra.mxu0 %v175
    %507 = vmatpush.msra.mxu0 %v174
    %508 = vmatpush.msra.mxu0 %v173
    %509 = vmatpush.msra.mxu0 %v172
    %510 = vmatmul.f32.gmra.mxu0 %v310
    %v511 = vpop.f32.mrf.mxu0
    %v512 = vadd.f32 %v492, %v511
    %513 = vdwg.mxu0
    %514 = vmatpush.msra.mxu0 %v203
    %515 = vmatpush.msra.mxu0 %v202
    %516 = vmatpush.msra.mxu0 %v201
    %517 = vmatpush.msra.mxu0 %v200
    %518 = vmatpush.msra.mxu0 %v199
    %519 = vmatpush.msra.mxu0 %v198
    %520 = vmatpush.msra.mxu0 %v197
    %521 = vmatpush.msra.mxu0 %v196
    %522 = vmatpush.msra.mxu0 %v195
    %523 = vmatpush.msra.mxu0 %v194
    %524 = vmatpush.msra.mxu0 %v193
    %525 = vmatpush.msra.mxu0 %v192
    %526 = vmatpush.msra.mxu0 %v191
    %527 = vmatpush.msra.mxu0 %v190
    %528 = vmatpush.msra.mxu0 %v189
    %529 = vmatpush.msra.mxu0 %v188
    %530 = vmatmul.f32.gmra.mxu0 %v311
    %v531 = vpop.f32.mrf.mxu0
    %v532 = vadd.f32 %v512, %v531
    %533 = vdwg.mxu0
    %534 = vmatpush.msra.mxu0 %v219
    %535 = vmatpush.msra.mxu0 %v218
    %536 = vmatpush.msra.mxu0 %v217
    %537 = vmatpush.msra.mxu0 %v216
    %538 = vmatpush.msra.mxu0 %v215
    %539 = vmatpush.msra.mxu0 %v214
    %540 = vmatpush.msra.mxu0 %v213
    %541 = vmatpush.msra.mxu0 %v212
    %542 = vmatpush.msra.mxu0 %v211
    %543 = vmatpush.msra.mxu0 %v210
    %544 = vmatpush.msra.mxu0 %v209
    %545 = vmatpush.msra.mxu0 %v208
    %546 = vmatpush.msra.mxu0 %v207
    %547 = vmatpush.msra.mxu0 %v206
    %548 = vmatpush.msra.mxu0 %v205
    %549 = vmatpush.msra.mxu0 %v204
    %550 = vmatmul.f32.gmra.mxu0 %v312
    %v551 = vpop.f32.mrf.mxu0
    %v552 = vadd.f32 %v532, %v551
    %553 = vdwg.mxu0
    %554 = vmatpush.msra.mxu0 %v235
    %555 = vmatpush.msra.mxu0 %v234
    %556 = vmatpush.msra.mxu0 %v233
    %557 = vmatpush.msra.mxu0 %v232
    %558 = vmatpush.msra.mxu0 %v231
    %559 = vmatpush.msra.mxu0 %v230
    %560 = vmatpush.msra.mxu0 %v229
    %561 = vmatpush.msra.mxu0 %v228
    %562 = vmatpush.msra.mxu0 %v227
    %563 = vmatpush.msra.mxu0 %v226
    %564 = vmatpush.msra.mxu0 %v225
    %565 = vmatpush.msra.mxu0 %v224
    %566 = vmatpush.msra.mxu0 %v223
    %567 = vmatpush.msra.mxu0 %v222
    %568 = vmatpush.msra.mxu0 %v221
    %569 = vmatpush.msra.mxu0 %v220
    %570 = vmatmul.f32.gmra.mxu0 %v313
    %v571 = vpop.f32.mrf.mxu0
    %v572 = vadd.f32 %v552, %v571
    %573 = vdwg.mxu0
    %574 = vmatpush.msra.mxu0 %v251
    %575 = vmatpush.msra.mxu0 %v250
    %576 = vmatpush.msra.mxu0 %v249
    %577 = vmatpush.msra.mxu0 %v248
    %578 = vmatpush.msra.mxu0 %v247
    %579 = vmatpush.msra.mxu0 %v246
    %580 = vmatpush.msra.mxu0 %v245
    %581 = vmatpush.msra.mxu0 %v244
    %582 = vmatpush.msra.mxu0 %v243
    %583 = vmatpush.msra.mxu0 %v242
    %584 = vmatpush.msra.mxu0 %v241
    %585 = vmatpush.msra.mxu0 %v240
    %586 = vmatpush.msra.mxu0 %v239
    %587 = vmatpush.msra.mxu0 %v238
    %588 = vmatpush.msra.mxu0 %v237
    %589 = vmatpush.msra.mxu0 %v236
    %590 = vmatmul.f32.gmra.mxu0 %v314
    %v591 = vpop.f32.mrf.mxu0
    %v592 = vadd.f32 %v572, %v591
    %593 = vdwg.mxu0
    %594 = vmatpush.msra.mxu0 %v267
    %595 = vmatpush.msra.mxu0 %v266
    %596 = vmatpush.msra.mxu0 %v265
    %597 = vmatpush.msra.mxu0 %v264
    %598 = vmatpush.msra.mxu0 %v263
    %599 = vmatpush.msra.mxu0 %v262
    %600 = vmatpush.msra.mxu0 %v261
    %601 = vmatpush.msra.mxu0 %v260
    %602 = vmatpush.msra.mxu0 %v259
    %603 = vmatpush.msra.mxu0 %v258
    %604 = vmatpush.msra.mxu0 %v257
    %605 = vmatpush.msra.mxu0 %v256
    %606 = vmatpush.msra.mxu0 %v255
    %607 = vmatpush.msra.mxu0 %v254
    %608 = vmatpush.msra.mxu0 %v253
    %609 = vmatpush.msra.mxu0 %v252
    %610 = vmatmul.f32.gmra.mxu0 %v315
    %v611 = vpop.f32.mrf.mxu0
    %v612 = vadd.f32 %v592, %v611
    %613 = vdwg.mxu0
    %614 = vmatpush.msra.mxu0 %v283
    %615 = vmatpush.msra.mxu0 %v282
    %616 = vmatpush.msra.mxu0 %v281
    %617 = vmatpush.msra.mxu0 %v280
    %618 = vmatpush.msra.mxu0 %v279
    %619 = vmatpush.msra.mxu0 %v278
    %620 = vmatpush.msra.mxu0 %v277
    %621 = vmatpush.msra.mxu0 %v276
    %622 = vmatpush.msra.mxu0 %v275
    %623 = vmatpush.msra.mxu0 %v274
    %624 = vmatpush.msra.mxu0 %v273
    %625 = vmatpush.msra.mxu0 %v272
    %626 = vmatpush.msra.mxu0 %v271
    %627 = vmatpush.msra.mxu0 %v270
    %628 = vmatpush.msra.mxu0 %v269
    %629 = vmatpush.msra.mxu0 %v268
    %630 = vmatmul.f32.gmra.mxu0 %v316
    %v631 = vpop.f32.mrf.mxu0
    %v632 = vadd.f32 %v612, %v631
    %633 = vdwg.mxu0
    %634 = vmatpush.msra.mxu0 %v299
    %635 = vmatpush.msra.mxu0 %v298
    %636 = vmatpush.msra.mxu0 %v297
    %637 = vmatpush.msra.mxu0 %v296
    %638 = vmatpush.msra.mxu0 %v295
    %639 = vmatpush.msra.mxu0 %v294
    %640 = vmatpush.msra.mxu0 %v293
    %641 = vmatpush.msra.mxu0 %v292
    %642 = vmatpush.msra.mxu0 %v291
    %643 = vmatpush.msra.mxu0 %v290
    %644 = vmatpush.msra.mxu0 %v289
    %645 = vmatpush.msra.mxu0 %v288
    %646 = vmatpush.msra.mxu0 %v287
    %647 = vmatpush.msra.mxu0 %v286
    %648 = vmatpush.msra.mxu0 %v285
    %649 = vmatpush.msra.mxu0 %v284
    %650 = vmatmul.f32.gmra.mxu0 %v317
    %v651 = vpop.f32.mrf.mxu0
    %v652 = vadd.f32 %v632, %v651
    %653 = vdwg.mxu0
    %v654 = vmul.f32 %v652, 0.0625
    %655 = vst [vmem:[#allocation7] sm:$0x1] %v654
    // Predicated region
    $region18: #{tpu_custom_call.1} parent=1 // pred_check
      _
    $region19: #{tpu_custom_call.1} parent=1 // pred_check_branch
      %657 = sbr.rel (0) target = $region21
    $region20: #{tpu_custom_call.1} parent=1 // pred_region
      %659 = vsyncadd [#allocation4], 0
      %s661 = sshll.u32 [#allocation7], 4
      %s662 = int_to_ptr.vmem [resolvable:$true] %s661
      %s663 = sshll.u32 %s2, 4
      %s664 = int_to_ptr.hbm [resolvable:$true] %s663
      %666 = dma.vmem_to_hbm [thread:$0]  %s662, 16, %s664, [#allocation4]
    $region21: #{tpu_custom_call.1} parent=1 // pred_fallthru
      _
    // Predicated region
    $region22: #{tpu_custom_call.1} parent=1 // pred_check
      _
    $region23: #{tpu_custom_call.1} parent=1 // pred_check_branch
      %668 = sbr.rel (0) target = $region25
    $region24: #{tpu_custom_call.1} parent=1 // pred_region
      %670 = dma.done [#allocation4], 16
    $region25: #{tpu_custom_call.1} parent=1 // pred_fallthru
      _
    %671 = vsyncpa [#allocation3], 1
    %672 = vsyncpa [#allocation6], 1
    %673 = vsyncpa [#allocation4], 1

</llo_original>
